<compile_context>
chip_gen: v7x
topology: tpu7x:2x2x1
jax: 0.10.0
libtpu: 0.0.40
codegen_flags: <defaults>
</compile_context>

<pallas_src>
import functools

import jax
import jax.numpy as jnp
import numpy as np
from jax import lax
from jax.experimental import pallas as pl
from jax.experimental.pallas import tpu as pltpu

_EPS = 1e-5
_SQRT2 = 1.4142135623730951


def _gelu_exact(x):
    # matches PyTorch F.gelu / nn.GELU() default (erf-based)
    return 0.5 * x * (1.0 + lax.erf(x / _SQRT2))


def _groupnorm1(acc, B, H, gamma_row, beta_row):
    # GroupNorm(num_groups=1): per-image statistics over all H*W*C elements.
    # Single-pass (sum + sum of squares) in f32; fine for the roughly
    # zero-mean post-conv activations (switch to two-pass if tolerances ever
    # tighten).
    WC = acc.shape[-1]
    a3 = acc.reshape(B, H, WC)
    cnt = float(H * WC)
    s1 = jnp.sum(jnp.sum(a3, axis=2, keepdims=True), axis=1, keepdims=True)
    s2 = jnp.sum(jnp.sum(a3 * a3, axis=2, keepdims=True), axis=1, keepdims=True)
    mean = s1 / cnt
    var = s2 / cnt - mean * mean
    xn = (a3 - mean) * lax.rsqrt(var + _EPS)
    out = xn * gamma_row.astype(jnp.float32) + beta_row.astype(jnp.float32)
    return out.reshape(B * H, WC)


def _double_conv_kernel(x_ref, w1_ref, g1_ref, b1_ref, w2_ref, g2_ref, b2_ref,
                        o_ref, pad_ref, *, B, H, W, Cin, Cmid, Cout, residual):
    # x_ref block: (B, Hp, W*Cin) -- B height-padded images, (W, C) on lanes.
    Hp = H + 2
    M = B * H
    xf = x_ref[...]                                      # (B, Hp, W*Cin)

    # ---- conv1: 3 wide-K matmuls, M = B*H rows on the MXU ------------------
    acc = jnp.zeros((M, W * Cmid), jnp.float32)
    for dy in range(3):
        lhs = xf[:, dy:dy + H, :].reshape(M, W * Cin)
        acc = acc + jnp.dot(lhs, w1_ref[dy],
                            preferred_element_type=jnp.float32)

    # ---- GroupNorm(1, Cmid) per image + exact GELU (lane-dense, f32) -------
    y = _groupnorm1(acc, B, H, g1_ref[0], b1_ref[0])
    y = _gelu_exact(y)

    # ---- stage y in the height-padded VMEM scratch for conv2.  Only the top
    #      and bottom halo rows need zeroing (no width padding any more) and
    #      they are zeroed every step: the batch grid axis is megacore-
    #      parallel, so each core owns its own scratch. ----------------------
    cdt = pad_ref.dtype
    pad_ref[:, 0:1, :] = jnp.zeros((B, 1, W * Cmid), cdt)
    pad_ref[:, Hp - 1:Hp, :] = jnp.zeros((B, 1, W * Cmid), cdt)
    pad_ref[:, 1:H + 1, :] = y.reshape(B, H, W * Cmid).astype(cdt)
    yp = pad_ref[...]                                    # (B, Hp, W*Cmid)

    # ---- conv2: 3 wide-K matmuls -------------------------------------------
    acc2 = jnp.zeros((M, W * Cout), jnp.float32)
    for dy in range(3):
        lhs = yp[:, dy:dy + H, :].reshape(M, W * Cmid)
        acc2 = acc2 + jnp.dot(lhs, w2_ref[dy],
                              preferred_element_type=jnp.float32)

    # ---- GroupNorm(1, Cout) (+ residual GELU) ------------------------------
    z = _groupnorm1(acc2, B, H, g2_ref[0], b2_ref[0])
    if residual:                                         # requires Cin == Cout
        # Lane-aligned residual read (no width padding, offset 0).  In bf16
        # mode the residual adds the bf16-rounded input (perf default).
        x_in = xf[:, 1:H + 1, :].reshape(M, W * Cin).astype(jnp.float32)
        z = _gelu_exact(x_in + z)

    # lane-dense (B, H, W*Cout) store
    o_ref[...] = z.reshape(B, H, W * Cout).astype(o_ref.dtype)


def _pick_batch_block(n, h, rows_target):
    """Largest batch divisor b with b*h <= rows_target, preferring a blocked
    grid of length >= 2 so both v7x TensorCores get work."""
    best = 1
    for b in range(1, n + 1):
        if n % b == 0 and b * h <= rows_target:
            best = b
    if n >= 2 and n // best < 2:
        for b in range(best, 0, -1):
            if n % b == 0 and n // b >= 2:
                best = b
                break
    return best


def double_conv(x_nchw, params, residual=False,
                compute_dtype=jnp.bfloat16, rows_target=256):
    """x_nchw: (N, Cin, H, W). params: (w1, g1, b1, w2, g2, b2), conv weights
    in PyTorch OIHW layout, gamma/beta as (C,).

    compute_dtype: dtype of the MXU inputs (activations / banded weights).
    bfloat16 is the performance default on every generation; accumulation and
    all GroupNorm/GELU math stay f32.  Pass jnp.float32 for tight numerics.
    rows_target: target matmul M (= B_blk*H) per grid step; 256 fills the
    v6e/v7x MXU, use 128 on v5e."""
    w1, g1, b1, w2, g2, b2 = params
    N, Cin, H, W = x_nchw.shape
    Cmid, Cout = w1.shape[0], w2.shape[0]
    Hp = H + 2
    if residual and Cin != Cout:
        raise ValueError(
            f"residual=True requires in_c == out_c, got {Cin} != {Cout}")

    B_blk = _pick_batch_block(N, H, rows_target)
    n_steps = N // B_blk

    # NCHW -> NHWC, zero-pad rows only (width padding is folded into the
    # clipped band below), flatten (W, C) onto the lane axis.
    x = jnp.transpose(x_nchw, (0, 2, 3, 1))
    x = jnp.pad(x, ((0, 0), (1, 1), (0, 0), (0, 0)))
    x_flat = x.reshape(N, Hp, W * Cin).astype(compute_dtype)

    # Banded per-dy conv weights, clipped at the image edges:
    #   big[dy][xin*Ci + ci, x*Co + co] = w[co, ci, dy, xin - x + 1]
    #   for xin - x in {-1, 0, 1} and 0 <= xin < W, else 0,
    # so conv == sum_dy x_flat[:, dy:dy+H, :] @ big[dy].
    shift = np.zeros((3, W, W), np.float32)
    for dx in range(3):
        xs = np.arange(W)
        xin = xs + dx - 1
        ok = (xin >= 0) & (xin < W)
        shift[dx, xs[ok], xin[ok]] = 1.0
    shift = jnp.asarray(shift)

    def banded(w):
        co, ci = w.shape[0], w.shape[1]
        wt = jnp.transpose(w, (2, 3, 1, 0)).astype(jnp.float32)  # (dy,dx,ci,co)
        big = jnp.einsum('axn,daio->dnixo', shift, wt)           # (dy,xin,ci,x,co)
        return big.reshape(3, W * ci, W * co).astype(compute_dtype)

    w1_b = banded(w1)
    w2_b = banded(w2)
    # GroupNorm affine params tiled to the flattened (W*C) lane layout, f32.
    g1_t = jnp.tile(g1, W).reshape(1, W * Cmid).astype(jnp.float32)
    b1_t = jnp.tile(b1, W).reshape(1, W * Cmid).astype(jnp.float32)
    g2_t = jnp.tile(g2, W).reshape(1, W * Cout).astype(jnp.float32)
    b2_t = jnp.tile(b2, W).reshape(1, W * Cout).astype(jnp.float32)

    # VMEM budget: double-buffered activation/output blocks + (double-buffered,
    # grid-invariant) banded weights + staging scratch + f32 accumulator
    # headroom, with 2x margin.
    # TODO(synk): single-buffer the grid-invariant weight/affine BlockSpecs or
    # switch to the per-tap formulation once the banded weights stop fitting
    # (v7x hits the wall first: 64 MiB physical VMEM).
    cb = jnp.dtype(compute_dtype).itemsize
    ob = jnp.dtype(x_nchw.dtype).itemsize
    est = (2 * B_blk * Hp * W * Cin * cb              # x block
           + 2 * B_blk * H * W * Cout * ob            # out block
           + 2 * 3 * W * Cin * W * Cmid * cb          # banded w1
           + 2 * 3 * W * Cmid * W * Cout * cb         # banded w2
           + 2 * 2 * W * (Cmid + Cout) * 4            # gamma/beta
           + B_blk * Hp * W * Cmid * cb               # conv2 staging scratch
           + 4 * B_blk * H * W * (Cmid + Cout) * 4)   # f32 acc/temporaries
    vmem_limit = int(min(max(2 * est + (4 << 20), 32 << 20), 64 << 20))

    kernel = functools.partial(_double_conv_kernel, B=B_blk, H=H, W=W,
                               Cin=Cin, Cmid=Cmid, Cout=Cout,
                               residual=residual)

    out_flat = pl.pallas_call(
        kernel,
        out_shape=jax.ShapeDtypeStruct((N, H, W * Cout), x_nchw.dtype),
        grid_spec=pltpu.PrefetchScalarGridSpec(
            num_scalar_prefetch=0,
            grid=(n_steps,),
            in_specs=[
                pl.BlockSpec((B_blk, Hp, W * Cin), lambda n: (n, 0, 0)),
                pl.BlockSpec((3, W * Cin, W * Cmid), lambda n: (0, 0, 0)),
                pl.BlockSpec((1, W * Cmid), lambda n: (0, 0)),
                pl.BlockSpec((1, W * Cmid), lambda n: (0, 0)),
                pl.BlockSpec((3, W * Cmid, W * Cout), lambda n: (0, 0, 0)),
                pl.BlockSpec((1, W * Cout), lambda n: (0, 0)),
                pl.BlockSpec((1, W * Cout), lambda n: (0, 0)),
            ],
            out_specs=pl.BlockSpec((B_blk, H, W * Cout), lambda n: (n, 0, 0)),
            scratch_shapes=[pltpu.VMEM((B_blk, Hp, W * Cmid), compute_dtype)],
        ),
        compiler_params=pltpu.CompilerParams(
            dimension_semantics=("parallel",),
            vmem_limit_bytes=vmem_limit),
    )(x_flat, w1_b, g1_t, b1_t, w2_b, g2_t, b2_t)

    out = out_flat.reshape(N, H, W, Cout)
    return jnp.transpose(out, (0, 3, 1, 2))              # back to NCHW


# ----------------------- pure-JAX reference (for checking) -----------------
def double_conv_ref(x, params, residual=False):
    w1, g1, b1, w2, g2, b2 = params

    def conv(x, w):
        return lax.conv_general_dilated(
            x, w, window_strides=(1, 1), padding=((1, 1), (1, 1)),
            dimension_numbers=("NCHW", "OIHW", "NCHW"))

    def gn(x, g, b):
        mean = jnp.mean(x, axis=(1, 2, 3), keepdims=True)
        var = jnp.mean((x - mean) ** 2, axis=(1, 2, 3), keepdims=True)
        xn = (x - mean) / jnp.sqrt(var + _EPS)
        return xn * g.reshape(1, -1, 1, 1) + b.reshape(1, -1, 1, 1)

    y = gn(conv(x, w1), g1, b1)
    y = _gelu_exact(y)
    y = gn(conv(y, w2), g2, b2)
    if residual:
        return _gelu_exact(x + y)
    return y


def _make_params(key, in_c, out_c, mid_c):
    k1, k2, k3, k4 = jax.random.split(key, 4)
    w1 = 0.2 * jax.random.normal(k1, (mid_c, in_c, 3, 3), jnp.float32)
    w2 = 0.2 * jax.random.normal(k2, (out_c, mid_c, 3, 3), jnp.float32)
    g1 = 1.0 + 0.1 * jax.random.normal(k3, (mid_c,), jnp.float32)
    b1 = 0.05 * jax.random.normal(k3, (mid_c,), jnp.float32)
    g2 = 1.0 + 0.1 * jax.random.normal(k4, (out_c,), jnp.float32)
    b2 = 0.05 * jax.random.normal(k4, (out_c,), jnp.float32)
    return (w1, g1, b1, w2, g2, b2)


if __name__ == "__main__":
    key = jax.random.PRNGKey(0)
    kx, kp1, kp2 = jax.random.split(key, 3)

    x = jax.random.normal(kx, (2, 4, 16, 16), jnp.float32)

    # Case 1: residual=False, in_c=4 -> out_c=8 (mid defaults to out_c).
    params = _make_params(kp1, in_c=4, out_c=8, mid_c=8)
    ref = double_conv_ref(x, params, residual=False)
    out_f32 = jax.block_until_ready(
        double_conv(x, params, residual=False, compute_dtype=jnp.float32))
    assert out_f32.shape == (2, 8, 16, 16)
    np.testing.assert_allclose(np.asarray(out_f32), np.asarray(ref),
                               rtol=1e-4, atol=1e-4)
    # bf16 MXU inputs (performance default): f32 accumulation, loose check.
    out_bf16 = jax.block_until_ready(double_conv(x, params, residual=False))
    np.testing.assert_allclose(np.asarray(out_bf16), np.asarray(ref),
                               rtol=5e-2, atol=1e-1)

    # Case 2: residual=True, in_c == out_c == 4.
    params_r = _make_params(kp2, in_c=4, out_c=4, mid_c=4)
    ref_r = double_conv_ref(x, params_r, residual=True)
    out_r = jax.block_until_ready(
        double_conv(x, params_r, residual=True, compute_dtype=jnp.float32))
    assert out_r.shape == (2, 4, 16, 16)
    np.testing.assert_allclose(np.asarray(out_r), np.asarray(ref_r),
                               rtol=1e-4, atol=1e-4)
    out_r_bf16 = jax.block_until_ready(double_conv(x, params_r, residual=True))
    np.testing.assert_allclose(np.asarray(out_r_bf16), np.asarray(ref_r),
                               rtol=5e-2, atol=1e-1)

    print("KERNEL_OK")
</pallas_src>

<mosaic_0001>
module attributes {stable_mosaic.version = 11 : i64} {
  func.func @_double_conv_kernel(%arg0: i32, %arg1: memref<1x18x64xf32, #tpu.memory_space<vmem>>, %arg2: memref<3x64x128xf32, #tpu.memory_space<vmem>>, %arg3: memref<1x128xf32, #tpu.memory_space<vmem>>, %arg4: memref<1x128xf32, #tpu.memory_space<vmem>>, %arg5: memref<3x128x128xf32, #tpu.memory_space<vmem>>, %arg6: memref<1x128xf32, #tpu.memory_space<vmem>>, %arg7: memref<1x128xf32, #tpu.memory_space<vmem>>, %arg8: memref<1x16x128xf32, #tpu.memory_space<vmem>>, %arg9: memref<1x18x128xf32, #tpu.memory_space<vmem>>) attributes {dimension_semantics = [#tpu.dimension_semantics<parallel>], iteration_bounds = array<i64: 2>, scalar_prefetch = 0 : i64, scratch_operands = 1 : i64, tpu.core_type = #tpu.core_type<tc>, window_params = [{transform_indices = @transform_0, window_bounds = array<i64: 1, 18, 64>}, {pipeline_mode = #tpu.pipeline_mode<synchronous>, transform_indices = @transform_1, window_bounds = array<i64: 3, 64, 128>}, {pipeline_mode = #tpu.pipeline_mode<synchronous>, transform_indices = @transform_2, window_bounds = array<i64: 1, 128>}, {pipeline_mode = #tpu.pipeline_mode<synchronous>, transform_indices = @transform_3, window_bounds = array<i64: 1, 128>}, {pipeline_mode = #tpu.pipeline_mode<synchronous>, transform_indices = @transform_4, window_bounds = array<i64: 3, 128, 128>}, {pipeline_mode = #tpu.pipeline_mode<synchronous>, transform_indices = @transform_5, window_bounds = array<i64: 1, 128>}, {pipeline_mode = #tpu.pipeline_mode<synchronous>, transform_indices = @transform_6, window_bounds = array<i64: 1, 128>}, {transform_indices = @transform_7, window_bounds = array<i64: 1, 16, 128>}]} {
    %c0 = arith.constant 0 : index
    %c0_0 = arith.constant 0 : index
    %c0_1 = arith.constant 0 : index
    %0 = vector.load %arg1[%c0, %c0_0, %c0_1] : memref<1x18x64xf32, #tpu.memory_space<vmem>>, vector<1x18x64xf32>
    %cst = arith.constant 0.000000e+00 : f32
    %1 = vector.broadcast %cst : f32 to vector<16x128xf32>
    %2 = vector.extract_strided_slice %0 {offsets = [0, 0, 0], sizes = [1, 16, 64], strides = [1, 1, 1]} : vector<1x18x64xf32> to vector<1x16x64xf32>
    %3 = vector.shape_cast %2 : vector<1x16x64xf32> to vector<16x64xf32>
    %c0_2 = arith.constant 0 : index
    %c0_3 = arith.constant 0 : index
    %c0_4 = arith.constant 0 : index
    %4 = vector.load %arg2[%c0_2, %c0_3, %c0_4] : memref<3x64x128xf32, #tpu.memory_space<vmem>>, vector<1x64x128xf32>
    %5 = vector.shape_cast %4 : vector<1x64x128xf32> to vector<64x128xf32>
    %cst_5 = arith.constant dense<0.000000e+00> : vector<16x128xf32>
    %6 = tpu.matmul %3, %5, %cst_5 {dimension_numbers = #tpu.dot_dimension_numbers<[1], [0], [0], [1], [0, 0, 1, 1], [], []>} : vector<16x64xf32>, vector<64x128xf32>, vector<16x128xf32> -> vector<16x128xf32>
    %7 = arith.addf %1, %6 : vector<16x128xf32>
    %8 = vector.extract_strided_slice %0 {offsets = [0, 1, 0], sizes = [1, 16, 64], strides = [1, 1, 1]} : vector<1x18x64xf32> to vector<1x16x64xf32>
    %9 = vector.shape_cast %8 : vector<1x16x64xf32> to vector<16x64xf32>
    %c1 = arith.constant 1 : index
    %c0_6 = arith.constant 0 : index
    %c0_7 = arith.constant 0 : index
    %10 = vector.load %arg2[%c1, %c0_6, %c0_7] : memref<3x64x128xf32, #tpu.memory_space<vmem>>, vector<1x64x128xf32>
    %11 = vector.shape_cast %10 : vector<1x64x128xf32> to vector<64x128xf32>
    %cst_8 = arith.constant dense<0.000000e+00> : vector<16x128xf32>
    %12 = tpu.matmul %9, %11, %cst_8 {dimension_numbers = #tpu.dot_dimension_numbers<[1], [0], [0], [1], [0, 0, 1, 1], [], []>} : vector<16x64xf32>, vector<64x128xf32>, vector<16x128xf32> -> vector<16x128xf32>
    %13 = arith.addf %7, %12 : vector<16x128xf32>
    %14 = vector.extract_strided_slice %0 {offsets = [0, 2, 0], sizes = [1, 16, 64], strides = [1, 1, 1]} : vector<1x18x64xf32> to vector<1x16x64xf32>
    %15 = vector.shape_cast %14 : vector<1x16x64xf32> to vector<16x64xf32>
    %c2 = arith.constant 2 : index
    %c0_9 = arith.constant 0 : index
    %c0_10 = arith.constant 0 : index
    %16 = vector.load %arg2[%c2, %c0_9, %c0_10] : memref<3x64x128xf32, #tpu.memory_space<vmem>>, vector<1x64x128xf32>
    %17 = vector.shape_cast %16 : vector<1x64x128xf32> to vector<64x128xf32>
    %cst_11 = arith.constant dense<0.000000e+00> : vector<16x128xf32>
    %18 = tpu.matmul %15, %17, %cst_11 {dimension_numbers = #tpu.dot_dimension_numbers<[1], [0], [0], [1], [0, 0, 1, 1], [], []>} : vector<16x64xf32>, vector<64x128xf32>, vector<16x128xf32> -> vector<16x128xf32>
    %19 = arith.addf %13, %18 : vector<16x128xf32>
    %c0_12 = arith.constant 0 : index
    %c0_13 = arith.constant 0 : index
    %20 = vector.load %arg3[%c0_12, %c0_13] : memref<1x128xf32, #tpu.memory_space<vmem>>, vector<1x128xf32>
    %21 = vector.shape_cast %20 : vector<1x128xf32> to vector<128xf32>
    %c0_14 = arith.constant 0 : index
    %c0_15 = arith.constant 0 : index
    %22 = vector.load %arg4[%c0_14, %c0_15] : memref<1x128xf32, #tpu.memory_space<vmem>>, vector<1x128xf32>
    %23 = vector.shape_cast %22 : vector<1x128xf32> to vector<128xf32>
    %24 = vector.shape_cast %19 : vector<16x128xf32> to vector<1x16x128xf32>
    %cst_16 = arith.constant dense<0.000000e+00> : vector<1x16xf32>
    %25 = vector.multi_reduction <add>, %24, %cst_16 [2] : vector<1x16x128xf32> to vector<1x16xf32>
    %26 = vector.shape_cast %25 : vector<1x16xf32> to vector<1x16x1xf32>
    %cst_17 = arith.constant dense<0.000000e+00> : vector<1x1xf32>
    %27 = vector.multi_reduction <add>, %26, %cst_17 [1] : vector<1x16x1xf32> to vector<1x1xf32>
    %28 = vector.shape_cast %27 : vector<1x1xf32> to vector<1x1x1xf32>
    %29 = arith.mulf %24, %24 : vector<1x16x128xf32>
    %cst_18 = arith.constant dense<0.000000e+00> : vector<1x16xf32>
    %30 = vector.multi_reduction <add>, %29, %cst_18 [2] : vector<1x16x128xf32> to vector<1x16xf32>
    %31 = vector.shape_cast %30 : vector<1x16xf32> to vector<1x16x1xf32>
    %cst_19 = arith.constant dense<0.000000e+00> : vector<1x1xf32>
    %32 = vector.multi_reduction <add>, %31, %cst_19 [1] : vector<1x16x1xf32> to vector<1x1xf32>
    %33 = vector.shape_cast %32 : vector<1x1xf32> to vector<1x1x1xf32>
    %cst_20 = arith.constant 2.048000e+03 : f32
    %34 = vector.broadcast %cst_20 : f32 to vector<1x1x1xf32>
    %35 = arith.divf %28, %34 : vector<1x1x1xf32>
    %cst_21 = arith.constant 2.048000e+03 : f32
    %36 = vector.broadcast %cst_21 : f32 to vector<1x1x1xf32>
    %37 = arith.divf %33, %36 : vector<1x1x1xf32>
    %38 = arith.mulf %35, %35 : vector<1x1x1xf32>
    %39 = arith.subf %37, %38 : vector<1x1x1xf32>
    %40 = vector.broadcast %35 : vector<1x1x1xf32> to vector<1x16x128xf32>
    %41 = arith.subf %24, %40 : vector<1x16x128xf32>
    %cst_22 = arith.constant 9.99999974E-6 : f32
    %42 = vector.broadcast %cst_22 : f32 to vector<1x1x1xf32>
    %43 = arith.addf %39, %42 : vector<1x1x1xf32>
    %44 = math.rsqrt %43 : vector<1x1x1xf32>
    %45 = vector.broadcast %44 : vector<1x1x1xf32> to vector<1x16x128xf32>
    %46 = arith.mulf %41, %45 : vector<1x16x128xf32>
    %47 = vector.shape_cast %21 : vector<128xf32> to vector<1x1x128xf32>
    %48 = vector.broadcast %47 : vector<1x1x128xf32> to vector<1x16x128xf32>
    %49 = arith.mulf %46, %48 : vector<1x16x128xf32>
    %50 = vector.shape_cast %23 : vector<128xf32> to vector<1x1x128xf32>
    %51 = vector.broadcast %50 : vector<1x1x128xf32> to vector<1x16x128xf32>
    %52 = arith.addf %49, %51 : vector<1x16x128xf32>
    %53 = vector.shape_cast %52 : vector<1x16x128xf32> to vector<16x128xf32>
    %cst_23 = arith.constant 5.000000e-01 : f32
    %54 = vector.broadcast %cst_23 : f32 to vector<16x128xf32>
    %55 = arith.mulf %54, %53 : vector<16x128xf32>
    %cst_24 = arith.constant 1.41421354 : f32
    %56 = vector.broadcast %cst_24 : f32 to vector<16x128xf32>
    %57 = arith.divf %53, %56 : vector<16x128xf32>
    %58 = math.erf %57 : vector<16x128xf32>
    %cst_25 = arith.constant 1.000000e+00 : f32
    %59 = vector.broadcast %cst_25 : f32 to vector<16x128xf32>
    %60 = arith.addf %59, %58 : vector<16x128xf32>
    %61 = arith.mulf %55, %60 : vector<16x128xf32>
    %cst_26 = arith.constant 0.000000e+00 : f32
    %62 = vector.broadcast %cst_26 : f32 to vector<1x1x128xf32>
    %c0_27 = arith.constant 0 : index
    %c0_28 = arith.constant 0 : index
    %c0_29 = arith.constant 0 : index
    %63 = vector.load %arg9[%c0_27, %c0_28, %c0_29] : memref<1x18x128xf32, #tpu.memory_space<vmem>>, vector<1x1x128xf32>
    tpu.vector_store %arg9[%c0_27, %c0_28, %c0_29], %62 {strides = array<i32>} : memref<1x18x128xf32, #tpu.memory_space<vmem>>, vector<1x1x128xf32>,
    %cst_30 = arith.constant 0.000000e+00 : f32
    %64 = vector.broadcast %cst_30 : f32 to vector<1x1x128xf32>
    %c0_31 = arith.constant 0 : index
    %c17 = arith.constant 17 : index
    %c0_32 = arith.constant 0 : index
    %65 = vector.load %arg9[%c0_31, %c17, %c0_32] : memref<1x18x128xf32, #tpu.memory_space<vmem>>, vector<1x1x128xf32>
    tpu.vector_store %arg9[%c0_31, %c17, %c0_32], %64 {strides = array<i32>} : memref<1x18x128xf32, #tpu.memory_space<vmem>>, vector<1x1x128xf32>,
    %66 = vector.shape_cast %61 : vector<16x128xf32> to vector<1x16x128xf32>
    %c0_33 = arith.constant 0 : index
    %c1_34 = arith.constant 1 : index
    %c0_35 = arith.constant 0 : index
    %67 = vector.load %arg9[%c0_33, %c1_34, %c0_35] : memref<1x18x128xf32, #tpu.memory_space<vmem>>, vector<1x16x128xf32>
    tpu.vector_store %arg9[%c0_33, %c1_34, %c0_35], %66 {strides = array<i32>} : memref<1x18x128xf32, #tpu.memory_space<vmem>>, vector<1x16x128xf32>,
    %c0_36 = arith.constant 0 : index
    %c0_37 = arith.constant 0 : index
    %c0_38 = arith.constant 0 : index
    %68 = vector.load %arg9[%c0_36, %c0_37, %c0_38] : memref<1x18x128xf32, #tpu.memory_space<vmem>>, vector<1x18x128xf32>
    %cst_39 = arith.constant 0.000000e+00 : f32
    %69 = vector.broadcast %cst_39 : f32 to vector<16x128xf32>
    %70 = vector.extract_strided_slice %68 {offsets = [0, 0, 0], sizes = [1, 16, 128], strides = [1, 1, 1]} : vector<1x18x128xf32> to vector<1x16x128xf32>
    %71 = vector.shape_cast %70 : vector<1x16x128xf32> to vector<16x128xf32>
    %c0_40 = arith.constant 0 : index
    %c0_41 = arith.constant 0 : index
    %c0_42 = arith.constant 0 : index
    %72 = vector.load %arg5[%c0_40, %c0_41, %c0_42] : memref<3x128x128xf32, #tpu.memory_space<vmem>>, vector<1x128x128xf32>
    %73 = vector.shape_cast %72 : vector<1x128x128xf32> to vector<128x128xf32>
    %cst_43 = arith.constant dense<0.000000e+00> : vector<16x128xf32>
    %74 = tpu.matmul %71, %73, %cst_43 {dimension_numbers = #tpu.dot_dimension_numbers<[1], [0], [0], [1], [0, 0, 1, 1], [], []>} : vector<16x128xf32>, vector<128x128xf32>, vector<16x128xf32> -> vector<16x128xf32>
    %75 = arith.addf %69, %74 : vector<16x128xf32>
    %76 = vector.extract_strided_slice %68 {offsets = [0, 1, 0], sizes = [1, 16, 128], strides = [1, 1, 1]} : vector<1x18x128xf32> to vector<1x16x128xf32>
    %77 = vector.shape_cast %76 : vector<1x16x128xf32> to vector<16x128xf32>
    %c1_44 = arith.constant 1 : index
    %c0_45 = arith.constant 0 : index
    %c0_46 = arith.constant 0 : index
    %78 = vector.load %arg5[%c1_44, %c0_45, %c0_46] : memref<3x128x128xf32, #tpu.memory_space<vmem>>, vector<1x128x128xf32>
    %79 = vector.shape_cast %78 : vector<1x128x128xf32> to vector<128x128xf32>
    %cst_47 = arith.constant dense<0.000000e+00> : vector<16x128xf32>
    %80 = tpu.matmul %77, %79, %cst_47 {dimension_numbers = #tpu.dot_dimension_numbers<[1], [0], [0], [1], [0, 0, 1, 1], [], []>} : vector<16x128xf32>, vector<128x128xf32>, vector<16x128xf32> -> vector<16x128xf32>
    %81 = arith.addf %75, %80 : vector<16x128xf32>
    %82 = vector.extract_strided_slice %68 {offsets = [0, 2, 0], sizes = [1, 16, 128], strides = [1, 1, 1]} : vector<1x18x128xf32> to vector<1x16x128xf32>
    %83 = vector.shape_cast %82 : vector<1x16x128xf32> to vector<16x128xf32>
    %c2_48 = arith.constant 2 : index
    %c0_49 = arith.constant 0 : index
    %c0_50 = arith.constant 0 : index
    %84 = vector.load %arg5[%c2_48, %c0_49, %c0_50] : memref<3x128x128xf32, #tpu.memory_space<vmem>>, vector<1x128x128xf32>
    %85 = vector.shape_cast %84 : vector<1x128x128xf32> to vector<128x128xf32>
    %cst_51 = arith.constant dense<0.000000e+00> : vector<16x128xf32>
    %86 = tpu.matmul %83, %85, %cst_51 {dimension_numbers = #tpu.dot_dimension_numbers<[1], [0], [0], [1], [0, 0, 1, 1], [], []>} : vector<16x128xf32>, vector<128x128xf32>, vector<16x128xf32> -> vector<16x128xf32>
    %87 = arith.addf %81, %86 : vector<16x128xf32>
    %c0_52 = arith.constant 0 : index
    %c0_53 = arith.constant 0 : index
    %88 = vector.load %arg6[%c0_52, %c0_53] : memref<1x128xf32, #tpu.memory_space<vmem>>, vector<1x128xf32>
    %89 = vector.shape_cast %88 : vector<1x128xf32> to vector<128xf32>
    %c0_54 = arith.constant 0 : index
    %c0_55 = arith.constant 0 : index
    %90 = vector.load %arg7[%c0_54, %c0_55] : memref<1x128xf32, #tpu.memory_space<vmem>>, vector<1x128xf32>
    %91 = vector.shape_cast %90 : vector<1x128xf32> to vector<128xf32>
    %92 = vector.shape_cast %87 : vector<16x128xf32> to vector<1x16x128xf32>
    %cst_56 = arith.constant dense<0.000000e+00> : vector<1x16xf32>
    %93 = vector.multi_reduction <add>, %92, %cst_56 [2] : vector<1x16x128xf32> to vector<1x16xf32>
    %94 = vector.shape_cast %93 : vector<1x16xf32> to vector<1x16x1xf32>
    %cst_57 = arith.constant dense<0.000000e+00> : vector<1x1xf32>
    %95 = vector.multi_reduction <add>, %94, %cst_57 [1] : vector<1x16x1xf32> to vector<1x1xf32>
    %96 = vector.shape_cast %95 : vector<1x1xf32> to vector<1x1x1xf32>
    %97 = arith.mulf %92, %92 : vector<1x16x128xf32>
    %cst_58 = arith.constant dense<0.000000e+00> : vector<1x16xf32>
    %98 = vector.multi_reduction <add>, %97, %cst_58 [2] : vector<1x16x128xf32> to vector<1x16xf32>
    %99 = vector.shape_cast %98 : vector<1x16xf32> to vector<1x16x1xf32>
    %cst_59 = arith.constant dense<0.000000e+00> : vector<1x1xf32>
    %100 = vector.multi_reduction <add>, %99, %cst_59 [1] : vector<1x16x1xf32> to vector<1x1xf32>
    %101 = vector.shape_cast %100 : vector<1x1xf32> to vector<1x1x1xf32>
    %cst_60 = arith.constant 2.048000e+03 : f32
    %102 = vector.broadcast %cst_60 : f32 to vector<1x1x1xf32>
    %103 = arith.divf %96, %102 : vector<1x1x1xf32>
    %cst_61 = arith.constant 2.048000e+03 : f32
    %104 = vector.broadcast %cst_61 : f32 to vector<1x1x1xf32>
    %105 = arith.divf %101, %104 : vector<1x1x1xf32>
    %106 = arith.mulf %103, %103 : vector<1x1x1xf32>
    %107 = arith.subf %105, %106 : vector<1x1x1xf32>
    %108 = vector.broadcast %103 : vector<1x1x1xf32> to vector<1x16x128xf32>
    %109 = arith.subf %92, %108 : vector<1x16x128xf32>
    %cst_62 = arith.constant 9.99999974E-6 : f32
    %110 = vector.broadcast %cst_62 : f32 to vector<1x1x1xf32>
    %111 = arith.addf %107, %110 : vector<1x1x1xf32>
    %112 = math.rsqrt %111 : vector<1x1x1xf32>
    %113 = vector.broadcast %112 : vector<1x1x1xf32> to vector<1x16x128xf32>
    %114 = arith.mulf %109, %113 : vector<1x16x128xf32>
    %115 = vector.shape_cast %89 : vector<128xf32> to vector<1x1x128xf32>
    %116 = vector.broadcast %115 : vector<1x1x128xf32> to vector<1x16x128xf32>
    %117 = arith.mulf %114, %116 : vector<1x16x128xf32>
    %118 = vector.shape_cast %91 : vector<128xf32> to vector<1x1x128xf32>
    %119 = vector.broadcast %118 : vector<1x1x128xf32> to vector<1x16x128xf32>
    %120 = arith.addf %117, %119 : vector<1x16x128xf32>
    %121 = vector.shape_cast %120 : vector<1x16x128xf32> to vector<16x128xf32>
    %122 = vector.shape_cast %121 : vector<16x128xf32> to vector<1x16x128xf32>
    %c0_63 = arith.constant 0 : index
    %c0_64 = arith.constant 0 : index
    %c0_65 = arith.constant 0 : index
    %123 = vector.load %arg8[%c0_63, %c0_64, %c0_65] : memref<1x16x128xf32, #tpu.memory_space<vmem>>, vector<1x16x128xf32>
    tpu.vector_store %arg8[%c0_63, %c0_64, %c0_65], %122 {strides = array<i32>} : memref<1x16x128xf32, #tpu.memory_space<vmem>>, vector<1x16x128xf32>,
    return
  }
  func.func @transform_0(%arg0: i32) -> (i32, i32, i32) {
    %c0_i32 = arith.constant 0 : i32
    %c0_i32_0 = arith.constant 0 : i32
    %c0_i32_1 = arith.constant 0 : i32
    return %arg0, %c0_i32, %c0_i32_0 : i32, i32, i32
  }
  func.func @transform_1(%arg0: i32) -> (i32, i32, i32) {
    %c0_i32 = arith.constant 0 : i32
    %c0_i32_0 = arith.constant 0 : i32
    %c0_i32_1 = arith.constant 0 : i32
    %c0_i32_2 = arith.constant 0 : i32
    return %c0_i32, %c0_i32_0, %c0_i32_1 : i32, i32, i32
  }
  func.func @transform_2(%arg0: i32) -> (i32, i32) {
    %c0_i32 = arith.constant 0 : i32
    %c0_i32_0 = arith.constant 0 : i32
    %c0_i32_1 = arith.constant 0 : i32
    return %c0_i32, %c0_i32_0 : i32, i32
  }
  func.func @transform_3(%arg0: i32) -> (i32, i32) {
    %c0_i32 = arith.constant 0 : i32
    %c0_i32_0 = arith.constant 0 : i32
    %c0_i32_1 = arith.constant 0 : i32
    return %c0_i32, %c0_i32_0 : i32, i32
  }
  func.func @transform_4(%arg0: i32) -> (i32, i32, i32) {
    %c0_i32 = arith.constant 0 : i32
    %c0_i32_0 = arith.constant 0 : i32
    %c0_i32_1 = arith.constant 0 : i32
    %c0_i32_2 = arith.constant 0 : i32
    return %c0_i32, %c0_i32_0, %c0_i32_1 : i32, i32, i32
  }
  func.func @transform_5(%arg0: i32) -> (i32, i32) {
    %c0_i32 = arith.constant 0 : i32
    %c0_i32_0 = arith.constant 0 : i32
    %c0_i32_1 = arith.constant 0 : i32
    return %c0_i32, %c0_i32_0 : i32, i32
  }
  func.func @transform_6(%arg0: i32) -> (i32, i32) {
    %c0_i32 = arith.constant 0 : i32
    %c0_i32_0 = arith.constant 0 : i32
    %c0_i32_1 = arith.constant 0 : i32
    return %c0_i32, %c0_i32_0 : i32, i32
  }
  func.func @transform_7(%arg0: i32) -> (i32, i32, i32) {
    %c0_i32 = arith.constant 0 : i32
    %c0_i32_0 = arith.constant 0 : i32
    %c0_i32_1 = arith.constant 0 : i32
    return %arg0, %c0_i32, %c0_i32_0 : i32, i32, i32
  }
}

</mosaic_0001>

<llo_original>
// kernel: tpu_custom_call.1
$region0: #{tpu_custom_call.1}
  #allocation0 [shape = 'u32[]', space=smem, size = 0x4, offset = 0x4, fixed_abs, tag = 'smem constant byte address 0x4 - core index']
  #allocation1 [shape = 'u32[144,128]{1,0:T(1,128)}', space=vmem, size = 0x12000, scoped, tag = 'internal scratch']
  #allocation2 [shape = 'f32[1,18,128]{2,1,0:T(8,128)}', space=vmem, size = 0x3000, scoped, tag = 'scratch operand']
  %s0 = inlined_call_operand.vmem [shape: f32[2,18,64], index: 0, kind: input, shape index: {}]
  %s1 = inlined_call_operand.hbm [shape: f32[3,64,128], index: 1, kind: input, shape index: {}]
  %s2 = inlined_call_operand.vmem [shape: f32[1,128], index: 2, kind: input, shape index: {}]
  %s3 = inlined_call_operand.vmem [shape: f32[1,128], index: 3, kind: input, shape index: {}]
  %s4 = inlined_call_operand.hbm [shape: f32[3,128,128], index: 4, kind: input, shape index: {}]
  %s5 = inlined_call_operand.vmem [shape: f32[1,128], index: 5, kind: input, shape index: {}]
  %s6 = inlined_call_operand.vmem [shape: f32[1,128], index: 6, kind: input, shape index: {}]
  %s7 = inlined_call_operand.hbm [shape: f32[2,16,128], index: 7, kind: output, shape index: {}]
  %s8 = sld [smem:[#allocation0]]
  $region69: #{tpu_custom_call.1} parent=0
    _
  %s10 = ssub.s32 1, %s8
  %s11 = scalar_select 0, %s10, %s8
  $region1: #{tpu_custom_call.1} parent=0
    #allocation3 [shape = 'u8[98304]{0}', space=vmem, size = 0x18000, scoped, tag = 'input window, operand 1, single buffered']
    #allocation4 [shape = 's32[2]{0}', space=sflag, size = 0x8, scoped, tag = 'scoped memory for tpu_custom_call.1']
    #allocation5 [shape = 's32[2]{0}', space=sflag, size = 0x8, scoped, tag = 'scoped memory for tpu_custom_call.1']
    #allocation6 [shape = 'u8[196608]{0}', space=vmem, size = 0x30000, scoped, tag = 'input window, operand 4, single buffered']
    #allocation7 [shape = 's32[1]{0}', space=sflag, size = 0x4, scoped, tag = 'scoped memory for tpu_custom_call.1']
    #allocation8 [shape = 'u8[16384]{0}', space=vmem, size = 0x4000, scoped, tag = 'output window, operand 0']
    %12 = vsyncpa [#allocation4], 0
    %13 = vsyncpa [#allocation7], 0
    %14 = vsyncpa [#allocation5], 0
    %s15 = scalar_lea.sflag [#allocation5], 1
    %16 = vsyncpa %s15, 0
    loop: start=0, step=1, limit=4
    $region2: #{tpu_custom_call.1} parent=1 // loop_pre_header
      _
    $region3: #{tpu_custom_call.1} parent=1 // loop_header
      %s18 = sphi 0, %s22
      %p19 = scmp.ge.s32.totalorder %s18, 4
      %s28 = sphi 0, %s30
      %s31 = sphi 0, %s28
      %s32 = sphi 0, %s31
      %s48 = sphi 0, %s32
      %s52 = sphi 0, %s52
      %s54 = sphi 0, %s52
      %s55 = sphi 0, %s54
      %s69 = sphi 0, %s55
      %s73 = sphi 0, %s73
      %s75 = sphi 0, %s73
      %s76 = sphi 0, %s75
      %s90 = sphi 0, %s76
      %s94 = sphi 0, %s94
      %s96 = sphi 0, %s94
      %s97 = sphi 0, %s96
      %s111 = sphi 0, %s97
      %s115 = sphi 0, %s115
      %s117 = sphi 0, %s115
      %s118 = sphi 0, %s117
      %s132 = sphi 0, %s118
      %s136 = sphi 0, %s136
      %s138 = sphi 0, %s136
      %s139 = sphi 0, %s138
      %s153 = sphi 0, %s139
      %s157 = sphi 0, %s157
      %s159 = sphi 0, %s157
      %s160 = sphi 0, %s159
      %s174 = sphi 0, %s160
      %s180 = sphi 0, %s182
      %s183 = sphi 0, %s180
      %s184 = sphi 0, %s183
      %s200 = sphi 0, %s184
    $region4: #{tpu_custom_call.1} parent=1 // loop_header_branch
      %21 = sbr.rel (%p19) target = $region8
    $region5: #{tpu_custom_call.1} parent=1 // loop_body
      %s23 = ssub.s32 %s18, 1
      %s24 = ssub.s32 %s18, 2
      %s25 = sadd.s32 %s18, 1
      %s26 = ssub.s32 %s18, %s25
      %p27 = scmp.eq.s32.totalorder %s26, 0
      %s29 = sadd.s32 %s28, 1
      %s30 = scalar_select %p27, %s28, %s29
      %p33 = pneg %p27
      %p34 = scmp.eq.s32.totalorder %s18, 1
      %p35 = por %p33, %p34
      %p36 = scmp.ne.s32.totalorder %s28, %s31
      %p37 = scmp.eq.s32.totalorder %s18, 0
      %p38 = por %p36, %p37
      %p39 = scmp.ne.s32.totalorder %s28, %s31
      %p40 = scmp.eq.s32.totalorder %s23, 1
      %p41 = por %p39, %p40
      %p42 = scmp.ne.s32.totalorder %s31, %s32
      %p43 = scmp.eq.s32.totalorder %s23, 0
      %p44 = por %p42, %p43
      %p45 = scmp.ne.s32.totalorder %s31, %s32
      %p46 = scmp.eq.s32.totalorder %s24, 1
      %p47 = por %p45, %p46
      %p49 = scmp.ne.s32.totalorder %s32, %s48
      %p50 = scmp.eq.s32.totalorder %s24, 0
      %p51 = por %p49, %p50
      %s53 = sadd.s32 %s52, 1
      %p56 = scmp.eq.s32.totalorder %s18, 1
      %p57 = scmp.ne.s32.totalorder %s52, %s54
      %p58 = scmp.eq.s32.totalorder %s18, 0
      %p59 = por %p57, %p58
      %p60 = scmp.ne.s32.totalorder %s52, %s54
      %p61 = scmp.eq.s32.totalorder %s23, 1
      %p62 = por %p60, %p61
      %p63 = scmp.ne.s32.totalorder %s54, %s55
      %p64 = scmp.eq.s32.totalorder %s23, 0
      %p65 = por %p63, %p64
      %p66 = scmp.ne.s32.totalorder %s54, %s55
      %p67 = scmp.eq.s32.totalorder %s24, 1
      %p68 = por %p66, %p67
      %p70 = scmp.ne.s32.totalorder %s55, %s69
      %p71 = scmp.eq.s32.totalorder %s24, 0
      %p72 = por %p70, %p71
      %s74 = sadd.s32 %s73, 1
      %p77 = scmp.eq.s32.totalorder %s18, 1
      %p78 = scmp.ne.s32.totalorder %s73, %s75
      %p79 = scmp.eq.s32.totalorder %s18, 0
      %p80 = por %p78, %p79
      %p81 = scmp.ne.s32.totalorder %s73, %s75
      %p82 = scmp.eq.s32.totalorder %s23, 1
      %p83 = por %p81, %p82
      %p84 = scmp.ne.s32.totalorder %s75, %s76
      %p85 = scmp.eq.s32.totalorder %s23, 0
      %p86 = por %p84, %p85
      %p87 = scmp.ne.s32.totalorder %s75, %s76
      %p88 = scmp.eq.s32.totalorder %s24, 1
      %p89 = por %p87, %p88
      %p91 = scmp.ne.s32.totalorder %s76, %s90
      %p92 = scmp.eq.s32.totalorder %s24, 0
      %p93 = por %p91, %p92
      %s95 = sadd.s32 %s94, 1
      %p98 = scmp.eq.s32.totalorder %s18, 1
      %p99 = scmp.ne.s32.totalorder %s94, %s96
      %p100 = scmp.eq.s32.totalorder %s18, 0
      %p101 = por %p99, %p100
      %p102 = scmp.ne.s32.totalorder %s94, %s96
      %p103 = scmp.eq.s32.totalorder %s23, 1
      %p104 = por %p102, %p103
      %p105 = scmp.ne.s32.totalorder %s96, %s97
      %p106 = scmp.eq.s32.totalorder %s23, 0
      %p107 = por %p105, %p106
      %p108 = scmp.ne.s32.totalorder %s96, %s97
      %p109 = scmp.eq.s32.totalorder %s24, 1
      %p110 = por %p108, %p109
      %p112 = scmp.ne.s32.totalorder %s97, %s111
      %p113 = scmp.eq.s32.totalorder %s24, 0
      %p114 = por %p112, %p113
      %s116 = sadd.s32 %s115, 1
      %p119 = scmp.eq.s32.totalorder %s18, 1
      %p120 = scmp.ne.s32.totalorder %s115, %s117
      %p121 = scmp.eq.s32.totalorder %s18, 0
      %p122 = por %p120, %p121
      %p123 = scmp.ne.s32.totalorder %s115, %s117
      %p124 = scmp.eq.s32.totalorder %s23, 1
      %p125 = por %p123, %p124
      %p126 = scmp.ne.s32.totalorder %s117, %s118
      %p127 = scmp.eq.s32.totalorder %s23, 0
      %p128 = por %p126, %p127
      %p129 = scmp.ne.s32.totalorder %s117, %s118
      %p130 = scmp.eq.s32.totalorder %s24, 1
      %p131 = por %p129, %p130
      %p133 = scmp.ne.s32.totalorder %s118, %s132
      %p134 = scmp.eq.s32.totalorder %s24, 0
      %p135 = por %p133, %p134
      %s137 = sadd.s32 %s136, 1
      %p140 = scmp.eq.s32.totalorder %s18, 1
      %p141 = scmp.ne.s32.totalorder %s136, %s138
      %p142 = scmp.eq.s32.totalorder %s18, 0
      %p143 = por %p141, %p142
      %p144 = scmp.ne.s32.totalorder %s136, %s138
      %p145 = scmp.eq.s32.totalorder %s23, 1
      %p146 = por %p144, %p145
      %p147 = scmp.ne.s32.totalorder %s138, %s139
      %p148 = scmp.eq.s32.totalorder %s23, 0
      %p149 = por %p147, %p148
      %p150 = scmp.ne.s32.totalorder %s138, %s139
      %p151 = scmp.eq.s32.totalorder %s24, 1
      %p152 = por %p150, %p151
      %p154 = scmp.ne.s32.totalorder %s139, %s153
      %p155 = scmp.eq.s32.totalorder %s24, 0
      %p156 = por %p154, %p155
      %s158 = sadd.s32 %s157, 1
      %p161 = scmp.eq.s32.totalorder %s18, 1
      %p162 = scmp.ne.s32.totalorder %s157, %s159
      %p163 = scmp.eq.s32.totalorder %s18, 0
      %p164 = por %p162, %p163
      %p165 = scmp.ne.s32.totalorder %s157, %s159
      %p166 = scmp.eq.s32.totalorder %s23, 1
      %p167 = por %p165, %p166
      %p168 = scmp.ne.s32.totalorder %s159, %s160
      %p169 = scmp.eq.s32.totalorder %s23, 0
      %p170 = por %p168, %p169
      %p171 = scmp.ne.s32.totalorder %s159, %s160
      %p172 = scmp.eq.s32.totalorder %s24, 1
      %p173 = por %p171, %p172
      %p175 = scmp.ne.s32.totalorder %s160, %s174
      %p176 = scmp.eq.s32.totalorder %s24, 0
      %p177 = por %p175, %p176
      %s178 = ssub.s32 %s18, %s25
      %p179 = scmp.eq.s32.totalorder %s178, 0
      %s181 = sadd.s32 %s180, 1
      %s182 = scalar_select %p179, %s180, %s181
      %p185 = pneg %p179
      %p186 = scmp.eq.s32.totalorder %s18, 1
      %p187 = por %p185, %p186
      %p188 = scmp.ne.s32.totalorder %s180, %s183
      %p189 = scmp.eq.s32.totalorder %s18, 0
      %p190 = por %p188, %p189
      %p191 = scmp.ne.s32.totalorder %s180, %s183
      %p192 = scmp.eq.s32.totalorder %s23, 1
      %p193 = por %p191, %p192
      %p194 = scmp.ne.s32.totalorder %s183, %s184
      %p195 = scmp.eq.s32.totalorder %s23, 0
      %p196 = por %p194, %p195
      %p197 = scmp.ne.s32.totalorder %s183, %s184
      %p198 = scmp.eq.s32.totalorder %s24, 1
      %p199 = por %p197, %p198
      %p201 = scmp.ne.s32.totalorder %s184, %s200
      %p202 = scmp.eq.s32.totalorder %s24, 0
      %p203 = por %p201, %p202
      %p204 = scmp.le.s32.totalorder 1, %s18
      %p205 = scmp.lt.s32.totalorder %s18, 3
      %p206 = pnand %p204, %p205
      %p207 = pneg %p206
      // Predicated region
      $region9: #{tpu_custom_call.1} parent=5 // pred_check
        _
      $region10: #{tpu_custom_call.1} parent=5 // pred_check_branch
        %209 = sbr.rel (%p206) target = $region12
      $region11: #{tpu_custom_call.1} parent=5 // pred_region
        %s210 = ssub.s32 %s18, 1
        // Predicated region
        $region13: #{tpu_custom_call.1} parent=11 // pred_check
          %p211 = pneg %p65
        $region14: #{tpu_custom_call.1} parent=11 // pred_check_branch
          %213 = sbr.rel (%p211) target = $region16
        $region15: #{tpu_custom_call.1} parent=11 // pred_region
          %s215 = ssub.s32 3072, 3072
          %216 = vsyncadd [#allocation4], %s215
          %s217 = sshll.u32 [#allocation3], 4
          %s218 = int_to_ptr.vmem [resolvable:$true] %s217
          %223 = dma.hbm_to_vmem [thread:$0]  %s1, 3072, %s218, [#allocation4], 128, 128, 8
        $region16: #{tpu_custom_call.1} parent=11 // pred_fallthru
          _
        // Predicated region
        $region17: #{tpu_custom_call.1} parent=11 // pred_check
          %p224 = pneg %p86
        $region18: #{tpu_custom_call.1} parent=11 // pred_check_branch
          %226 = sbr.rel (%p224) target = $region20
        $region19: #{tpu_custom_call.1} parent=11 // pred_region
          _
        $region20: #{tpu_custom_call.1} parent=11 // pred_fallthru
          _
        // Predicated region
        $region21: #{tpu_custom_call.1} parent=11 // pred_check
          %p227 = pneg %p107
        $region22: #{tpu_custom_call.1} parent=11 // pred_check_branch
          %229 = sbr.rel (%p227) target = $region24
        $region23: #{tpu_custom_call.1} parent=11 // pred_region
          _
        $region24: #{tpu_custom_call.1} parent=11 // pred_fallthru
          _
        // Predicated region
        $region25: #{tpu_custom_call.1} parent=11 // pred_check
          %p230 = pneg %p128
        $region26: #{tpu_custom_call.1} parent=11 // pred_check_branch
          %232 = sbr.rel (%p230) target = $region28
        $region27: #{tpu_custom_call.1} parent=11 // pred_region
          %s234 = ssub.s32 6144, 6144
          %235 = vsyncadd [#allocation7], %s234
          %s236 = sshll.u32 [#allocation6], 4
          %s237 = int_to_ptr.vmem [resolvable:$true] %s236
          %242 = dma.hbm_to_vmem [thread:$0]  %s4, 6144, %s237, [#allocation7], 128, 128, 8
        $region28: #{tpu_custom_call.1} parent=11 // pred_fallthru
          _
        // Predicated region
        $region29: #{tpu_custom_call.1} parent=11 // pred_check
          %p243 = pneg %p149
        $region30: #{tpu_custom_call.1} parent=11 // pred_check_branch
          %245 = sbr.rel (%p243) target = $region32
        $region31: #{tpu_custom_call.1} parent=11 // pred_region
          _
        $region32: #{tpu_custom_call.1} parent=11 // pred_fallthru
          _
        // Predicated region
        $region33: #{tpu_custom_call.1} parent=11 // pred_check
          %p246 = pneg %p170
        $region34: #{tpu_custom_call.1} parent=11 // pred_check_branch
          %248 = sbr.rel (%p246) target = $region36
        $region35: #{tpu_custom_call.1} parent=11 // pred_region
          _
        $region36: #{tpu_custom_call.1} parent=11 // pred_fallthru
          _
      $region12: #{tpu_custom_call.1} parent=5 // pred_fallthru
        _
      %p249 = scmp.lt.s32.totalorder %s18, 2
      // Predicated region
      $region37: #{tpu_custom_call.1} parent=5 // pred_check
        %p250 = pneg %p249
      $region38: #{tpu_custom_call.1} parent=5 // pred_check_branch
        %252 = sbr.rel (%p250) target = $region40
      $region39: #{tpu_custom_call.1} parent=5 // pred_region
        // Predicated region
        $region41: #{tpu_custom_call.1} parent=39 // pred_check
          %p253 = pneg %p38
        $region42: #{tpu_custom_call.1} parent=39 // pred_check_branch
          %255 = sbr.rel (%p253) target = $region44
        $region43: #{tpu_custom_call.1} parent=39 // pred_region
          %p256 = scmp.lt.s32.totalorder %s18, 1
          %s257 = scalar_select %p256, %s18, 1
          %s258 = smul.addr %s257, 3
          %s259 = smul.addr %s258, 8
          %s260 = scalar_lea.vmem %s0, %s259
        $region44: #{tpu_custom_call.1} parent=39 // pred_fallthru
          _
      $region40: #{tpu_custom_call.1} parent=5 // pred_fallthru
        _
      %p261 = scmp.le.s32.totalorder 1, %s18
      %p262 = scmp.lt.s32.totalorder %s18, 3
      %p263 = pnand %p261, %p262
      %p264 = pneg %p263
      // Predicated region
      $region45: #{tpu_custom_call.1} parent=5 // pred_check
        _
      $region46: #{tpu_custom_call.1} parent=5 // pred_check_branch
        %266 = sbr.rel (%p263) target = $region48
      $region47: #{tpu_custom_call.1} parent=5 // pred_region
        %s267 = ssub.s32 %s18, 1
        // Predicated region
        $region49: #{tpu_custom_call.1} parent=47 // pred_check
          %p268 = pneg %p65
        $region50: #{tpu_custom_call.1} parent=47 // pred_check_branch
          %270 = sbr.rel (%p268) target = $region52
        $region51: #{tpu_custom_call.1} parent=47 // pred_region
          %271 = dma.done [#allocation4], 3072
        $region52: #{tpu_custom_call.1} parent=47 // pred_fallthru
          _
        // Predicated region
        $region53: #{tpu_custom_call.1} parent=47 // pred_check
          %p272 = pneg %p128
        $region54: #{tpu_custom_call.1} parent=47 // pred_check_branch
          %274 = sbr.rel (%p272) target = $region56
        $region55: #{tpu_custom_call.1} parent=47 // pred_region
          %275 = dma.done [#allocation7], 6144
        $region56: #{tpu_custom_call.1} parent=47 // pred_fallthru
          _
        %p276 = scmp.lt.s32.totalorder %s23, 1
        %s277 = scalar_select %p276, %s23, 1
        %s278 = smul.addr %s277, 3
        %s279 = smul.addr %s278, 8
        %s280 = scalar_lea.vmem %s0, %s279
        %p281 = pneg %p44
        %p282 = pneg %p41
        %p283 = pneg %p65
        %p284 = pneg %p62
        %p285 = pneg %p86
        %p286 = pneg %p83
        %p287 = pneg %p107
        %p288 = pneg %p104
        %p289 = pneg %p128
        %p290 = pneg %p125
        %p291 = pneg %p149
        %p292 = pneg %p146
        %p293 = pneg %p170
        %p294 = pneg %p167
        %p295 = pneg %p196
        %p296 = pneg %p193
        %s297 = sand.u32 %s183, 1
        %s298 = scalar_lea.sflag [#allocation5], %s297
        %s299 = sand.u32 %s183, 1
        %s300 = smul.addr %s299, 16
        %s301 = scalar_lea.vmem [#allocation8], %s300
        %p302 = scmp.lt.s32.totalorder %s23, 1
        %s303 = scalar_select %p302, %s23, 1
        %s304 = smul.addr %s303, 3
        %s305 = smul.addr %s304, 8
        %s306 = scalar_lea.vmem %s0, %s305
        %v307 = vld [vmem:[%s306] sm:$0xff]
        %v308 = vld [vmem:[%s306 + $0x8] sm:$0xff]
        %v309 = vld [vmem:[%s306 + $0x10] sm:$0x3]
        %v310 = vld [vmem:[#allocation3] sm:$0xff]
        %v311 = vld [vmem:[#allocation3 + $0x8] sm:$0xff]
        %v312 = vld [vmem:[#allocation3 + $0x10] sm:$0xff]
        %v313 = vld [vmem:[#allocation3 + $0x18] sm:$0xff]
        %v314 = vld [vmem:[#allocation3 + $0x20] sm:$0xff]
        %v315 = vld [vmem:[#allocation3 + $0x28] sm:$0xff]
        %v316 = vld [vmem:[#allocation3 + $0x30] sm:$0xff]
        %v317 = vld [vmem:[#allocation3 + $0x38] sm:$0xff]
        %s318 = scalar_lea.vmem [#allocation3], 64
        %v319 = vld [vmem:[%s318] sm:$0xff]
        %v320 = vld [vmem:[%s318 + $0x8] sm:$0xff]
        %v321 = vld [vmem:[%s318 + $0x10] sm:$0xff]
        %v322 = vld [vmem:[%s318 + $0x18] sm:$0xff]
        %v323 = vld [vmem:[%s318 + $0x20] sm:$0xff]
        %v324 = vld [vmem:[%s318 + $0x28] sm:$0xff]
        %v325 = vld [vmem:[%s318 + $0x30] sm:$0xff]
        %v326 = vld [vmem:[%s318 + $0x38] sm:$0xff]
        %vm330 = vcmask 1046528
        %v331 = vrot.slane %v307, 1
        %v332 = vrot.slane %v308, 1
        %v333 = vsel %vm330, %v331, %v332
        %v334 = vrot.slane %v309, 1
        %v335 = vsel %vm330, %v332, %v334
        %vm336 = vcmask 523264
        %v337 = vsel %vm336, %v333, 0
        %v339 = vsel %vm336, %v335, 0
        %341 = vmatprep.subr.mxu0 0.0
        %342 = vmatpush1.msra.mxu0 %v319
        %343 = vmatprep.subr.mxu0 0.0
        %344 = vmatpush1.msra.mxu0 %v320
        %345 = vmatprep.subr.mxu0 0.0
        %346 = vmatpush1.msra.mxu0 %v321
        %347 = vmatprep.subr.mxu0 0.0
        %348 = vmatpush1.msra.mxu0 %v322
        %349 = vmatprep.subr.mxu0 0.0
        %350 = vmatpush1.msra.mxu0 %v323
        %351 = vmatprep.subr.mxu0 0.0
        %352 = vmatpush1.msra.mxu0 %v324
        %353 = vmatprep.subr.mxu0 0.0
        %354 = vmatpush1.msra.mxu0 %v325
        %355 = vmatprep.subr.mxu0 0.0
        %356 = vmatpush1.msra.mxu0 %v326
        %357 = vmatprep.subr.mxu0 0.0
        %358 = vmatpush1.msra.mxu0 0.0
        %359 = vmatprep.subr.mxu0 0.0
        %360 = vmatpush1.msra.mxu0 0.0
        %361 = vmatprep.subr.mxu0 0.0
        %362 = vmatpush1.msra.mxu0 0.0
        %363 = vmatprep.subr.mxu0 0.0
        %364 = vmatpush1.msra.mxu0 0.0
        %365 = vmatprep.subr.mxu0 0.0
        %366 = vmatpush1.msra.mxu0 0.0
        %367 = vmatprep.subr.mxu0 0.0
        %368 = vmatpush1.msra.mxu0 0.0
        %369 = vmatprep.subr.mxu0 0.0
        %370 = vmatpush1.msra.mxu0 0.0
        %371 = vmatprep.subr.mxu0 0.0
        %372 = vmatpush1.msra.mxu0 0.0
        %373 = vmatprep.subr.mxu0 0.0
        %374 = vmatpush1.msra.mxu0 0.0
        %375 = vmatprep.subr.mxu0 0.0
        %376 = vmatpush1.msra.mxu0 0.0
        %377 = vmatprep.subr.mxu0 0.0
        %378 = vmatpush1.msra.mxu0 0.0
        %379 = vmatprep.subr.mxu0 0.0
        %380 = vmatpush1.msra.mxu0 0.0
        %381 = vmatprep.subr.mxu0 0.0
        %382 = vmatpush1.msra.mxu0 0.0
        %383 = vmatprep.subr.mxu0 0.0
        %384 = vmatpush1.msra.mxu0 0.0
        %385 = vmatprep.subr.mxu0 0.0
        %386 = vmatpush1.msra.mxu0 0.0
        %387 = vmatprep.subr.mxu0 0.0
        %388 = vmatpush1.msra.mxu0 0.0
        %389 = vmatprep.subr.mxu0 0.0
        %390 = vmatpush1.msra.mxu0 0.0
        %391 = vmatprep.subr.mxu0 0.0
        %392 = vmatpush1.msra.mxu0 0.0
        %393 = vmatprep.subr.mxu0 0.0
        %394 = vmatpush1.msra.mxu0 0.0
        %395 = vmatprep.subr.mxu0 0.0
        %396 = vmatpush1.msra.mxu0 0.0
        %397 = vmatprep.subr.mxu0 0.0
        %398 = vmatpush1.msra.mxu0 0.0
        %399 = vmatprep.subr.mxu0 0.0
        %400 = vmatpush1.msra.mxu0 0.0
        %401 = vmatprep.subr.mxu0 0.0
        %402 = vmatpush1.msra.mxu0 0.0
        %403 = vmatprep.subr.mxu0 0.0
        %404 = vmatpush1.msra.mxu0 0.0
        %405 = vmatprep.mubr.f32.mxu0 0.0
        %406 = vmatmul.mubr.f32.gmra.mrb[0].mxu0 %v337
        %v407 = vpop.f32.mrb[0].mxu0
        %v408 = vadd.f32 0.0, %v407
        %v409 = vpop.f32.mrb[0].mxu0
        %410 = vmatprep.mubr.f32.mxu0 0.0
        %411 = vmatmul.mubr.f32.gmra.mrb[0].mxu0 %v339
        %v412 = vpop.f32.mrb[0].mxu0
        %v413 = vadd.f32 0.0, %v412
        %v414 = vpop.f32.mrb[0].mxu0
        %415 = vdwg.mxu0
        %v416 = vsel %vm336, %v307, 0
        %v418 = vsel %vm336, %v308, 0
        %420 = vmatprep.subr.mxu0 0.0
        %421 = vmatpush1.msra.mxu0 %v310
        %422 = vmatprep.subr.mxu0 0.0
        %423 = vmatpush1.msra.mxu0 %v311
        %424 = vmatprep.subr.mxu0 0.0
        %425 = vmatpush1.msra.mxu0 %v312
        %426 = vmatprep.subr.mxu0 0.0
        %427 = vmatpush1.msra.mxu0 %v313
        %428 = vmatprep.subr.mxu0 0.0
        %429 = vmatpush1.msra.mxu0 %v314
        %430 = vmatprep.subr.mxu0 0.0
        %431 = vmatpush1.msra.mxu0 %v315
        %432 = vmatprep.subr.mxu0 0.0
        %433 = vmatpush1.msra.mxu0 %v316
        %434 = vmatprep.subr.mxu0 0.0
        %435 = vmatpush1.msra.mxu0 %v317
        %436 = vmatprep.subr.mxu0 0.0
        %437 = vmatpush1.msra.mxu0 0.0
        %438 = vmatprep.subr.mxu0 0.0
        %439 = vmatpush1.msra.mxu0 0.0
        %440 = vmatprep.subr.mxu0 0.0
        %441 = vmatpush1.msra.mxu0 0.0
        %442 = vmatprep.subr.mxu0 0.0
        %443 = vmatpush1.msra.mxu0 0.0
        %444 = vmatprep.subr.mxu0 0.0
        %445 = vmatpush1.msra.mxu0 0.0
        %446 = vmatprep.subr.mxu0 0.0
        %447 = vmatpush1.msra.mxu0 0.0
        %448 = vmatprep.subr.mxu0 0.0
        %449 = vmatpush1.msra.mxu0 0.0
        %450 = vmatprep.subr.mxu0 0.0
        %451 = vmatpush1.msra.mxu0 0.0
        %452 = vmatprep.subr.mxu0 0.0
        %453 = vmatpush1.msra.mxu0 0.0
        %454 = vmatprep.subr.mxu0 0.0
        %455 = vmatpush1.msra.mxu0 0.0
        %456 = vmatprep.subr.mxu0 0.0
        %457 = vmatpush1.msra.mxu0 0.0
        %458 = vmatprep.subr.mxu0 0.0
        %459 = vmatpush1.msra.mxu0 0.0
        %460 = vmatprep.subr.mxu0 0.0
        %461 = vmatpush1.msra.mxu0 0.0
        %462 = vmatprep.subr.mxu0 0.0
        %463 = vmatpush1.msra.mxu0 0.0
        %464 = vmatprep.subr.mxu0 0.0
        %465 = vmatpush1.msra.mxu0 0.0
        %466 = vmatprep.subr.mxu0 0.0
        %467 = vmatpush1.msra.mxu0 0.0
        %468 = vmatprep.subr.mxu0 0.0
        %469 = vmatpush1.msra.mxu0 0.0
        %470 = vmatprep.subr.mxu0 0.0
        %471 = vmatpush1.msra.mxu0 0.0
        %472 = vmatprep.subr.mxu0 0.0
        %473 = vmatpush1.msra.mxu0 0.0
        %474 = vmatprep.subr.mxu0 0.0
        %475 = vmatpush1.msra.mxu0 0.0
        %476 = vmatprep.subr.mxu0 0.0
        %477 = vmatpush1.msra.mxu0 0.0
        %478 = vmatprep.subr.mxu0 0.0
        %479 = vmatpush1.msra.mxu0 0.0
        %480 = vmatprep.subr.mxu0 0.0
        %481 = vmatpush1.msra.mxu0 0.0
        %482 = vmatprep.subr.mxu0 0.0
        %483 = vmatpush1.msra.mxu0 0.0
        %484 = vmatprep.mubr.f32.mxu0 0.0
        %485 = vmatmul.mubr.f32.gmra.mrb[0].mxu0 %v416
        %v486 = vpop.f32.mrb[0].mxu0
        %v487 = vadd.f32 %v408, %v486
        %v488 = vpop.f32.mrb[0].mxu0
        %489 = vmatprep.mubr.f32.mxu0 0.0
        %490 = vmatmul.mubr.f32.gmra.mrb[0].mxu0 %v418
        %v491 = vpop.f32.mrb[0].mxu0
        %v492 = vadd.f32 %v413, %v491
        %v493 = vpop.f32.mrb[0].mxu0
        %494 = vdwg.mxu0
        %s495 = scalar_lea.vmem [#allocation3], 128
        %v496 = vld [vmem:[%s495] sm:$0xff]
        %v497 = vld [vmem:[%s495 + $0x8] sm:$0xff]
        %v498 = vld [vmem:[%s495 + $0x10] sm:$0xff]
        %v499 = vld [vmem:[%s495 + $0x18] sm:$0xff]
        %v500 = vld [vmem:[%s495 + $0x20] sm:$0xff]
        %v501 = vld [vmem:[%s495 + $0x28] sm:$0xff]
        %v502 = vld [vmem:[%s495 + $0x30] sm:$0xff]
        %v503 = vld [vmem:[%s495 + $0x38] sm:$0xff]
        %vm504 = vcmask 1045504
        %v505 = vrot.slane %v307, 2
        %v506 = vrot.slane %v308, 2
        %v507 = vsel %vm504, %v505, %v506
        %v508 = vrot.slane %v309, 2
        %v509 = vsel %vm504, %v506, %v508
        %v510 = vsel %vm336, %v507, 0
        %v512 = vsel %vm336, %v509, 0
        %514 = vmatprep.subr.mxu0 0.0
        %515 = vmatpush1.msra.mxu0 %v496
        %516 = vmatprep.subr.mxu0 0.0
        %517 = vmatpush1.msra.mxu0 %v497
        %518 = vmatprep.subr.mxu0 0.0
        %519 = vmatpush1.msra.mxu0 %v498
        %520 = vmatprep.subr.mxu0 0.0
        %521 = vmatpush1.msra.mxu0 %v499
        %522 = vmatprep.subr.mxu0 0.0
        %523 = vmatpush1.msra.mxu0 %v500
        %524 = vmatprep.subr.mxu0 0.0
        %525 = vmatpush1.msra.mxu0 %v501
        %526 = vmatprep.subr.mxu0 0.0
        %527 = vmatpush1.msra.mxu0 %v502
        %528 = vmatprep.subr.mxu0 0.0
        %529 = vmatpush1.msra.mxu0 %v503
        %530 = vmatprep.subr.mxu0 0.0
        %531 = vmatpush1.msra.mxu0 0.0
        %532 = vmatprep.subr.mxu0 0.0
        %533 = vmatpush1.msra.mxu0 0.0
        %534 = vmatprep.subr.mxu0 0.0
        %535 = vmatpush1.msra.mxu0 0.0
        %536 = vmatprep.subr.mxu0 0.0
        %537 = vmatpush1.msra.mxu0 0.0
        %538 = vmatprep.subr.mxu0 0.0
        %539 = vmatpush1.msra.mxu0 0.0
        %540 = vmatprep.subr.mxu0 0.0
        %541 = vmatpush1.msra.mxu0 0.0
        %542 = vmatprep.subr.mxu0 0.0
        %543 = vmatpush1.msra.mxu0 0.0
        %544 = vmatprep.subr.mxu0 0.0
        %545 = vmatpush1.msra.mxu0 0.0
        %546 = vmatprep.subr.mxu0 0.0
        %547 = vmatpush1.msra.mxu0 0.0
        %548 = vmatprep.subr.mxu0 0.0
        %549 = vmatpush1.msra.mxu0 0.0
        %550 = vmatprep.subr.mxu0 0.0
        %551 = vmatpush1.msra.mxu0 0.0
        %552 = vmatprep.subr.mxu0 0.0
        %553 = vmatpush1.msra.mxu0 0.0
        %554 = vmatprep.subr.mxu0 0.0
        %555 = vmatpush1.msra.mxu0 0.0
        %556 = vmatprep.subr.mxu0 0.0
        %557 = vmatpush1.msra.mxu0 0.0
        %558 = vmatprep.subr.mxu0 0.0
        %559 = vmatpush1.msra.mxu0 0.0
        %560 = vmatprep.subr.mxu0 0.0
        %561 = vmatpush1.msra.mxu0 0.0
        %562 = vmatprep.subr.mxu0 0.0
        %563 = vmatpush1.msra.mxu0 0.0
        %564 = vmatprep.subr.mxu0 0.0
        %565 = vmatpush1.msra.mxu0 0.0
        %566 = vmatprep.subr.mxu0 0.0
        %567 = vmatpush1.msra.mxu0 0.0
        %568 = vmatprep.subr.mxu0 0.0
        %569 = vmatpush1.msra.mxu0 0.0
        %570 = vmatprep.subr.mxu0 0.0
        %571 = vmatpush1.msra.mxu0 0.0
        %572 = vmatprep.subr.mxu0 0.0
        %573 = vmatpush1.msra.mxu0 0.0
        %574 = vmatprep.subr.mxu0 0.0
        %575 = vmatpush1.msra.mxu0 0.0
        %576 = vmatprep.subr.mxu0 0.0
        %577 = vmatpush1.msra.mxu0 0.0
        %578 = vmatprep.mubr.f32.mxu0 0.0
        %579 = vmatmul.mubr.f32.gmra.mrb[0].mxu0 %v510
        %v580 = vpop.f32.mrb[0].mxu0
        %v581 = vadd.f32 0.0, %v580
        %v582 = vpop.f32.mrb[0].mxu0
        %583 = vmatprep.mubr.f32.mxu0 0.0
        %584 = vmatmul.mubr.f32.gmra.mrb[0].mxu0 %v512
        %v585 = vpop.f32.mrb[0].mxu0
        %v586 = vadd.f32 0.0, %v585
        %v587 = vpop.f32.mrb[0].mxu0
        %588 = vdwg.mxu0
        %v589 = vadd.f32 %v487, %v581
        %v590 = vadd.f32 %v492, %v586
        %v591 = vld [vmem:[%s2] sm:$0x1]
        %v592 = vld [vmem:[%s3] sm:$0x1]
        %593 = vadd.xlane.f32.xlu0 %v589
        %v594 = vpop.xlane.xlu0 %593
        %595 = vadd.xlane.f32.xlu0 %v590
        %v596 = vpop.xlane.xlu0 %595
        %v597 = vadd.f32 %v594, %v596
        %v598 = vrot.slane %v597, 4
        %v599 = vadd.f32 %v597, %v598
        %v600 = vrot.slane %v599, 2
        %v601 = vadd.f32 %v599, %v600
        %v602 = vrot.slane %v601, 1
        %v603 = vadd.f32 %v601, %v602
        %v604 = vmul.f32 %v589, %v589
        %v605 = vmul.f32 %v590, %v590
        %606 = vadd.xlane.f32.xlu0 %v604
        %v607 = vpop.xlane.xlu0 %606
        %608 = vadd.xlane.f32.xlu0 %v605
        %v609 = vpop.xlane.xlu0 %608
        %v610 = vadd.f32 %v607, %v609
        %v611 = vrot.slane %v610, 4
        %v612 = vadd.f32 %v610, %v611
        %v613 = vrot.slane %v612, 2
        %v614 = vadd.f32 %v612, %v613
        %v615 = vrot.slane %v614, 1
        %v616 = vadd.f32 %v614, %v615
        %v617 = vrcp.pop 2048.0
        %v618 = vmul.f32 %v603, %v617
        %v619 = vmul.f32 %v616, %v617
        %v620 = vmul.f32 %v618, %v618
        %v621 = vsub.f32 %v619, %v620
        %v622 = vsub.f32 %v589, %v618
        %v623 = vsub.f32 %v590, %v618
        %v624 = vadd.f32 %v621, 1e-05
        %v625 = vrsqrt.pop %v624
        %v626 = vmul.f32 %v622, %v625
        %v627 = vmul.f32 %v623, %v625
        %v629 = vlaneseq
        %v630 = vshrl.u32 %v629, 7
        %v631 = vsub.s32 0, %v630
        %v632 = vrot.slane %v591, %v631
        %v634 = vmul.f32 %v626, %v632
        %v635 = vmul.f32 %v627, %v632
        %v637 = vlaneseq
        %v638 = vshrl.u32 %v637, 7
        %v639 = vsub.s32 0, %v638
        %v640 = vrot.slane %v592, %v639
        %v642 = vadd.f32 %v634, %v640
        %v643 = vadd.f32 %v635, %v640
        %v644 = vmul.f32 %v642, 0.5
        %v645 = vmul.f32 %v643, 0.5
        %v646 = vrcp.pop 1.4142135
        %v647 = vmul.f32 %v642, %v646
        %v648 = vmul.f32 %v643, %v646
        %v649 = verf.f32.pop %v647
        %v650 = verf.f32.pop %v648
        %v651 = vadd.f32 %v649, 1.0
        %v652 = vadd.f32 %v650, 1.0
        %v653 = vmul.f32 %v644, %v651
        %v654 = vmul.f32 %v645, %v652
        %655 = vst [vmem:[#allocation2] sm:$0x1] 0.0
        %656 = vst [vmem:[#allocation2 + $0x11] sm:$0x1] 0.0
        %657 = vst [vmem:[#allocation2 + $0x1] sm:$0xff] %v653
        %658 = vst [vmem:[#allocation2 + $0x9] sm:$0xff] %v654
        %v659 = vld [vmem:[#allocation2] sm:$0xff]
        %v660 = vld [vmem:[#allocation2 + $0x8] sm:$0xff]
        %v661 = vld [vmem:[#allocation2 + $0x10] sm:$0x3]
        %v662 = vld [vmem:[#allocation6] sm:$0xff]
        %v663 = vld [vmem:[#allocation6 + $0x8] sm:$0xff]
        %v664 = vld [vmem:[#allocation6 + $0x10] sm:$0xff]
        %v665 = vld [vmem:[#allocation6 + $0x18] sm:$0xff]
        %v666 = vld [vmem:[#allocation6 + $0x20] sm:$0xff]
        %v667 = vld [vmem:[#allocation6 + $0x28] sm:$0xff]
        %v668 = vld [vmem:[#allocation6 + $0x30] sm:$0xff]
        %v669 = vld [vmem:[#allocation6 + $0x38] sm:$0xff]
        %v670 = vld [vmem:[#allocation6 + $0x40] sm:$0xff]
        %v671 = vld [vmem:[#allocation6 + $0x48] sm:$0xff]
        %v672 = vld [vmem:[#allocation6 + $0x50] sm:$0xff]
        %v673 = vld [vmem:[#allocation6 + $0x58] sm:$0xff]
        %v674 = vld [vmem:[#allocation6 + $0x60] sm:$0xff]
        %v675 = vld [vmem:[#allocation6 + $0x68] sm:$0xff]
        %v676 = vld [vmem:[#allocation6 + $0x70] sm:$0xff]
        %v677 = vld [vmem:[#allocation6 + $0x78] sm:$0xff]
        %s678 = scalar_lea.vmem [#allocation6], 128
        %v679 = vld [vmem:[%s678] sm:$0xff]
        %v680 = vld [vmem:[%s678 + $0x8] sm:$0xff]
        %v681 = vld [vmem:[%s678 + $0x10] sm:$0xff]
        %v682 = vld [vmem:[%s678 + $0x18] sm:$0xff]
        %v683 = vld [vmem:[%s678 + $0x20] sm:$0xff]
        %v684 = vld [vmem:[%s678 + $0x28] sm:$0xff]
        %v685 = vld [vmem:[%s678 + $0x30] sm:$0xff]
        %v686 = vld [vmem:[%s678 + $0x38] sm:$0xff]
        %v687 = vld [vmem:[%s678 + $0x40] sm:$0xff]
        %v688 = vld [vmem:[%s678 + $0x48] sm:$0xff]
        %v689 = vld [vmem:[%s678 + $0x50] sm:$0xff]
        %v690 = vld [vmem:[%s678 + $0x58] sm:$0xff]
        %v691 = vld [vmem:[%s678 + $0x60] sm:$0xff]
        %v692 = vld [vmem:[%s678 + $0x68] sm:$0xff]
        %v693 = vld [vmem:[%s678 + $0x70] sm:$0xff]
        %v694 = vld [vmem:[%s678 + $0x78] sm:$0xff]
        %v698 = vrot.slane %v659, 1
        %v699 = vrot.slane %v660, 1
        %v700 = vsel %vm330, %v698, %v699
        %v701 = vrot.slane %v661, 1
        %v702 = vsel %vm330, %v699, %v701
        %705 = vmatprep.subr.mxu0 0.0
        %706 = vmatpush1.msra.mxu0 %v679
        %707 = vmatprep.subr.mxu0 0.0
        %708 = vmatpush1.msra.mxu0 %v680
        %709 = vmatprep.subr.mxu0 0.0
        %710 = vmatpush1.msra.mxu0 %v681
        %711 = vmatprep.subr.mxu0 0.0
        %712 = vmatpush1.msra.mxu0 %v682
        %713 = vmatprep.subr.mxu0 0.0
        %714 = vmatpush1.msra.mxu0 %v683
        %715 = vmatprep.subr.mxu0 0.0
        %716 = vmatpush1.msra.mxu0 %v684
        %717 = vmatprep.subr.mxu0 0.0
        %718 = vmatpush1.msra.mxu0 %v685
        %719 = vmatprep.subr.mxu0 0.0
        %720 = vmatpush1.msra.mxu0 %v686
        %721 = vmatprep.subr.mxu0 0.0
        %722 = vmatpush1.msra.mxu0 %v687
        %723 = vmatprep.subr.mxu0 0.0
        %724 = vmatpush1.msra.mxu0 %v688
        %725 = vmatprep.subr.mxu0 0.0
        %726 = vmatpush1.msra.mxu0 %v689
        %727 = vmatprep.subr.mxu0 0.0
        %728 = vmatpush1.msra.mxu0 %v690
        %729 = vmatprep.subr.mxu0 0.0
        %730 = vmatpush1.msra.mxu0 %v691
        %731 = vmatprep.subr.mxu0 0.0
        %732 = vmatpush1.msra.mxu0 %v692
        %733 = vmatprep.subr.mxu0 0.0
        %734 = vmatpush1.msra.mxu0 %v693
        %735 = vmatprep.subr.mxu0 0.0
        %736 = vmatpush1.msra.mxu0 %v694
        %737 = vmatprep.subr.mxu0 0.0
        %738 = vmatpush1.msra.mxu0 0.0
        %739 = vmatprep.subr.mxu0 0.0
        %740 = vmatpush1.msra.mxu0 0.0
        %741 = vmatprep.subr.mxu0 0.0
        %742 = vmatpush1.msra.mxu0 0.0
        %743 = vmatprep.subr.mxu0 0.0
        %744 = vmatpush1.msra.mxu0 0.0
        %745 = vmatprep.subr.mxu0 0.0
        %746 = vmatpush1.msra.mxu0 0.0
        %747 = vmatprep.subr.mxu0 0.0
        %748 = vmatpush1.msra.mxu0 0.0
        %749 = vmatprep.subr.mxu0 0.0
        %750 = vmatpush1.msra.mxu0 0.0
        %751 = vmatprep.subr.mxu0 0.0
        %752 = vmatpush1.msra.mxu0 0.0
        %753 = vmatprep.subr.mxu0 0.0
        %754 = vmatpush1.msra.mxu0 0.0
        %755 = vmatprep.subr.mxu0 0.0
        %756 = vmatpush1.msra.mxu0 0.0
        %757 = vmatprep.subr.mxu0 0.0
        %758 = vmatpush1.msra.mxu0 0.0
        %759 = vmatprep.subr.mxu0 0.0
        %760 = vmatpush1.msra.mxu0 0.0
        %761 = vmatprep.subr.mxu0 0.0
        %762 = vmatpush1.msra.mxu0 0.0
        %763 = vmatprep.subr.mxu0 0.0
        %764 = vmatpush1.msra.mxu0 0.0
        %765 = vmatprep.subr.mxu0 0.0
        %766 = vmatpush1.msra.mxu0 0.0
        %767 = vmatprep.subr.mxu0 0.0
        %768 = vmatpush1.msra.mxu0 0.0
        %769 = vmatprep.mubr.f32.mxu0 0.0
        %770 = vmatmul.mubr.f32.gmra.mrb[0].mxu0 %v700
        %v771 = vpop.f32.mrb[0].mxu0
        %v772 = vadd.f32 0.0, %v771
        %v773 = vpop.f32.mrb[0].mxu0
        %774 = vmatprep.mubr.f32.mxu0 0.0
        %775 = vmatmul.mubr.f32.gmra.mrb[0].mxu0 %v702
        %v776 = vpop.f32.mrb[0].mxu0
        %v777 = vadd.f32 0.0, %v776
        %v778 = vpop.f32.mrb[0].mxu0
        %779 = vdwg.mxu0
        %780 = vmatprep.subr.mxu0 0.0
        %781 = vmatpush1.msra.mxu0 %v662
        %782 = vmatprep.subr.mxu0 0.0
        %783 = vmatpush1.msra.mxu0 %v663
        %784 = vmatprep.subr.mxu0 0.0
        %785 = vmatpush1.msra.mxu0 %v664
        %786 = vmatprep.subr.mxu0 0.0
        %787 = vmatpush1.msra.mxu0 %v665
        %788 = vmatprep.subr.mxu0 0.0
        %789 = vmatpush1.msra.mxu0 %v666
        %790 = vmatprep.subr.mxu0 0.0
        %791 = vmatpush1.msra.mxu0 %v667
        %792 = vmatprep.subr.mxu0 0.0
        %793 = vmatpush1.msra.mxu0 %v668
        %794 = vmatprep.subr.mxu0 0.0
        %795 = vmatpush1.msra.mxu0 %v669
        %796 = vmatprep.subr.mxu0 0.0
        %797 = vmatpush1.msra.mxu0 %v670
        %798 = vmatprep.subr.mxu0 0.0
        %799 = vmatpush1.msra.mxu0 %v671
        %800 = vmatprep.subr.mxu0 0.0
        %801 = vmatpush1.msra.mxu0 %v672
        %802 = vmatprep.subr.mxu0 0.0
        %803 = vmatpush1.msra.mxu0 %v673
        %804 = vmatprep.subr.mxu0 0.0
        %805 = vmatpush1.msra.mxu0 %v674
        %806 = vmatprep.subr.mxu0 0.0
        %807 = vmatpush1.msra.mxu0 %v675
        %808 = vmatprep.subr.mxu0 0.0
        %809 = vmatpush1.msra.mxu0 %v676
        %810 = vmatprep.subr.mxu0 0.0
        %811 = vmatpush1.msra.mxu0 %v677
        %812 = vmatprep.subr.mxu0 0.0
        %813 = vmatpush1.msra.mxu0 0.0
        %814 = vmatprep.subr.mxu0 0.0
        %815 = vmatpush1.msra.mxu0 0.0
        %816 = vmatprep.subr.mxu0 0.0
        %817 = vmatpush1.msra.mxu0 0.0
        %818 = vmatprep.subr.mxu0 0.0
        %819 = vmatpush1.msra.mxu0 0.0
        %820 = vmatprep.subr.mxu0 0.0
        %821 = vmatpush1.msra.mxu0 0.0
        %822 = vmatprep.subr.mxu0 0.0
        %823 = vmatpush1.msra.mxu0 0.0
        %824 = vmatprep.subr.mxu0 0.0
        %825 = vmatpush1.msra.mxu0 0.0
        %826 = vmatprep.subr.mxu0 0.0
        %827 = vmatpush1.msra.mxu0 0.0
        %828 = vmatprep.subr.mxu0 0.0
        %829 = vmatpush1.msra.mxu0 0.0
        %830 = vmatprep.subr.mxu0 0.0
        %831 = vmatpush1.msra.mxu0 0.0
        %832 = vmatprep.subr.mxu0 0.0
        %833 = vmatpush1.msra.mxu0 0.0
        %834 = vmatprep.subr.mxu0 0.0
        %835 = vmatpush1.msra.mxu0 0.0
        %836 = vmatprep.subr.mxu0 0.0
        %837 = vmatpush1.msra.mxu0 0.0
        %838 = vmatprep.subr.mxu0 0.0
        %839 = vmatpush1.msra.mxu0 0.0
        %840 = vmatprep.subr.mxu0 0.0
        %841 = vmatpush1.msra.mxu0 0.0
        %842 = vmatprep.subr.mxu0 0.0
        %843 = vmatpush1.msra.mxu0 0.0
        %844 = vmatprep.mubr.f32.mxu0 0.0
        %845 = vmatmul.mubr.f32.gmra.mrb[0].mxu0 %v659
        %v846 = vpop.f32.mrb[0].mxu0
        %v847 = vadd.f32 %v772, %v846
        %v848 = vpop.f32.mrb[0].mxu0
        %849 = vmatprep.mubr.f32.mxu0 0.0
        %850 = vmatmul.mubr.f32.gmra.mrb[0].mxu0 %v660
        %v851 = vpop.f32.mrb[0].mxu0
        %v852 = vadd.f32 %v777, %v851
        %v853 = vpop.f32.mrb[0].mxu0
        %854 = vdwg.mxu0
        %s855 = scalar_lea.vmem [#allocation6], 256
        %v856 = vld [vmem:[%s855] sm:$0xff]
        %v857 = vld [vmem:[%s855 + $0x8] sm:$0xff]
        %v858 = vld [vmem:[%s855 + $0x10] sm:$0xff]
        %v859 = vld [vmem:[%s855 + $0x18] sm:$0xff]
        %v860 = vld [vmem:[%s855 + $0x20] sm:$0xff]
        %v861 = vld [vmem:[%s855 + $0x28] sm:$0xff]
        %v862 = vld [vmem:[%s855 + $0x30] sm:$0xff]
        %v863 = vld [vmem:[%s855 + $0x38] sm:$0xff]
        %v864 = vld [vmem:[%s855 + $0x40] sm:$0xff]
        %v865 = vld [vmem:[%s855 + $0x48] sm:$0xff]
        %v866 = vld [vmem:[%s855 + $0x50] sm:$0xff]
        %v867 = vld [vmem:[%s855 + $0x58] sm:$0xff]
        %v868 = vld [vmem:[%s855 + $0x60] sm:$0xff]
        %v869 = vld [vmem:[%s855 + $0x68] sm:$0xff]
        %v870 = vld [vmem:[%s855 + $0x70] sm:$0xff]
        %v871 = vld [vmem:[%s855 + $0x78] sm:$0xff]
        %v872 = vrot.slane %v659, 2
        %v873 = vrot.slane %v660, 2
        %v874 = vsel %vm504, %v872, %v873
        %v875 = vrot.slane %v661, 2
        %v876 = vsel %vm504, %v873, %v875
        %879 = vmatprep.subr.mxu0 0.0
        %880 = vmatpush1.msra.mxu0 %v856
        %881 = vmatprep.subr.mxu0 0.0
        %882 = vmatpush1.msra.mxu0 %v857
        %883 = vmatprep.subr.mxu0 0.0
        %884 = vmatpush1.msra.mxu0 %v858
        %885 = vmatprep.subr.mxu0 0.0
        %886 = vmatpush1.msra.mxu0 %v859
        %887 = vmatprep.subr.mxu0 0.0
        %888 = vmatpush1.msra.mxu0 %v860
        %889 = vmatprep.subr.mxu0 0.0
        %890 = vmatpush1.msra.mxu0 %v861
        %891 = vmatprep.subr.mxu0 0.0
        %892 = vmatpush1.msra.mxu0 %v862
        %893 = vmatprep.subr.mxu0 0.0
        %894 = vmatpush1.msra.mxu0 %v863
        %895 = vmatprep.subr.mxu0 0.0
        %896 = vmatpush1.msra.mxu0 %v864
        %897 = vmatprep.subr.mxu0 0.0
        %898 = vmatpush1.msra.mxu0 %v865
        %899 = vmatprep.subr.mxu0 0.0
        %900 = vmatpush1.msra.mxu0 %v866
        %901 = vmatprep.subr.mxu0 0.0
        %902 = vmatpush1.msra.mxu0 %v867
        %903 = vmatprep.subr.mxu0 0.0
        %904 = vmatpush1.msra.mxu0 %v868
        %905 = vmatprep.subr.mxu0 0.0
        %906 = vmatpush1.msra.mxu0 %v869
        %907 = vmatprep.subr.mxu0 0.0
        %908 = vmatpush1.msra.mxu0 %v870
        %909 = vmatprep.subr.mxu0 0.0
        %910 = vmatpush1.msra.mxu0 %v871
        %911 = vmatprep.subr.mxu0 0.0
        %912 = vmatpush1.msra.mxu0 0.0
        %913 = vmatprep.subr.mxu0 0.0
        %914 = vmatpush1.msra.mxu0 0.0
        %915 = vmatprep.subr.mxu0 0.0
        %916 = vmatpush1.msra.mxu0 0.0
        %917 = vmatprep.subr.mxu0 0.0
        %918 = vmatpush1.msra.mxu0 0.0
        %919 = vmatprep.subr.mxu0 0.0
        %920 = vmatpush1.msra.mxu0 0.0
        %921 = vmatprep.subr.mxu0 0.0
        %922 = vmatpush1.msra.mxu0 0.0
        %923 = vmatprep.subr.mxu0 0.0
        %924 = vmatpush1.msra.mxu0 0.0
        %925 = vmatprep.subr.mxu0 0.0
        %926 = vmatpush1.msra.mxu0 0.0
        %927 = vmatprep.subr.mxu0 0.0
        %928 = vmatpush1.msra.mxu0 0.0
        %929 = vmatprep.subr.mxu0 0.0
        %930 = vmatpush1.msra.mxu0 0.0
        %931 = vmatprep.subr.mxu0 0.0
        %932 = vmatpush1.msra.mxu0 0.0
        %933 = vmatprep.subr.mxu0 0.0
        %934 = vmatpush1.msra.mxu0 0.0
        %935 = vmatprep.subr.mxu0 0.0
        %936 = vmatpush1.msra.mxu0 0.0
        %937 = vmatprep.subr.mxu0 0.0
        %938 = vmatpush1.msra.mxu0 0.0
        %939 = vmatprep.subr.mxu0 0.0
        %940 = vmatpush1.msra.mxu0 0.0
        %941 = vmatprep.subr.mxu0 0.0
        %942 = vmatpush1.msra.mxu0 0.0
        %943 = vmatprep.mubr.f32.mxu0 0.0
        %944 = vmatmul.mubr.f32.gmra.mrb[0].mxu0 %v874
        %v945 = vpop.f32.mrb[0].mxu0
        %v946 = vadd.f32 0.0, %v945
        %v947 = vpop.f32.mrb[0].mxu0
        %948 = vmatprep.mubr.f32.mxu0 0.0
        %949 = vmatmul.mubr.f32.gmra.mrb[0].mxu0 %v876
        %v950 = vpop.f32.mrb[0].mxu0
        %v951 = vadd.f32 0.0, %v950
        %v952 = vpop.f32.mrb[0].mxu0
        %953 = vdwg.mxu0
        %v954 = vadd.f32 %v847, %v946
        %v955 = vadd.f32 %v852, %v951
        %v956 = vld [vmem:[%s5] sm:$0x1]
        %v957 = vld [vmem:[%s6] sm:$0x1]
        %958 = vadd.xlane.f32.xlu0 %v954
        %v959 = vpop.xlane.xlu0 %958
        %960 = vadd.xlane.f32.xlu0 %v955
        %v961 = vpop.xlane.xlu0 %960
        %v962 = vadd.f32 %v959, %v961
        %v963 = vrot.slane %v962, 4
        %v964 = vadd.f32 %v962, %v963
        %v965 = vrot.slane %v964, 2
        %v966 = vadd.f32 %v964, %v965
        %v967 = vrot.slane %v966, 1
        %v968 = vadd.f32 %v966, %v967
        %v969 = vmul.f32 %v954, %v954
        %v970 = vmul.f32 %v955, %v955
        %971 = vadd.xlane.f32.xlu0 %v969
        %v972 = vpop.xlane.xlu0 %971
        %973 = vadd.xlane.f32.xlu0 %v970
        %v974 = vpop.xlane.xlu0 %973
        %v975 = vadd.f32 %v972, %v974
        %v976 = vrot.slane %v975, 4
        %v977 = vadd.f32 %v975, %v976
        %v978 = vrot.slane %v977, 2
        %v979 = vadd.f32 %v977, %v978
        %v980 = vrot.slane %v979, 1
        %v981 = vadd.f32 %v979, %v980
        %v982 = vmul.f32 %v968, %v617
        %v983 = vmul.f32 %v981, %v617
        %v984 = vmul.f32 %v982, %v982
        %v985 = vsub.f32 %v983, %v984
        %v986 = vsub.f32 %v954, %v982
        %v987 = vsub.f32 %v955, %v982
        %v988 = vadd.f32 %v985, 1e-05
        %v989 = vrsqrt.pop %v988
        %v990 = vmul.f32 %v986, %v989
        %v991 = vmul.f32 %v987, %v989
        %v993 = vlaneseq
        %v994 = vshrl.u32 %v993, 7
        %v995 = vsub.s32 0, %v994
        %v996 = vrot.slane %v956, %v995
        %v998 = vmul.f32 %v990, %v996
        %v999 = vmul.f32 %v991, %v996
        %v1001 = vlaneseq
        %v1002 = vshrl.u32 %v1001, 7
        %v1003 = vsub.s32 0, %v1002
        %v1004 = vrot.slane %v957, %v1003
        %v1006 = vadd.f32 %v998, %v1004
        %v1007 = vadd.f32 %v999, %v1004
        %1008 = vst [vmem:[%s301] sm:$0xff] %v1006
        %1009 = vst [vmem:[%s301 + $0x8] sm:$0xff] %v1007
        %s1010 = sand.u32 %s183, 1
        %s1011 = scalar_lea.sflag [#allocation5], %s1010
        %s1012 = sand.u32 %s183, 1
        %s1013 = smul.addr %s1012, 16
        %s1014 = scalar_lea.vmem [#allocation8], %s1013
        // Predicated region
        $region57: #{tpu_custom_call.1} parent=47 // pred_check
          %p1015 = pneg %p193
        $region58: #{tpu_custom_call.1} parent=47 // pred_check_branch
          %1017 = sbr.rel (%p1015) target = $region60
        $region59: #{tpu_custom_call.1} parent=47 // pred_region
          %s1019 = ssub.s32 256, 256
          %1020 = vsyncadd %s1011, %s1019
          %s1021 = smul.addr %s23, 2
          %s1022 = smul.addr %s1021, 128
          %s1023 = scalar_lea.hbm %s7, %s1022
          %s1024 = sshll.u32 %s1014, 4
          %s1025 = int_to_ptr.vmem [resolvable:$true] %s1024
          %1030 = dma.vmem_to_hbm [thread:$0]  %s1025, 256, %s1023, %s1011, 128, 128, 8
        $region60: #{tpu_custom_call.1} parent=47 // pred_fallthru
          _
      $region48: #{tpu_custom_call.1} parent=5 // pred_fallthru
        _
      %p1031 = scmp.le.s32.totalorder 2, %s18
      // Predicated region
      $region61: #{tpu_custom_call.1} parent=5 // pred_check
        %p1032 = pneg %p1031
      $region62: #{tpu_custom_call.1} parent=5 // pred_check_branch
        %1034 = sbr.rel (%p1032) target = $region64
      $region63: #{tpu_custom_call.1} parent=5 // pred_region
        %s1035 = ssub.s32 %s18, 2
        // Predicated region
        $region65: #{tpu_custom_call.1} parent=63 // pred_check
          %p1036 = pneg %p199
        $region66: #{tpu_custom_call.1} parent=63 // pred_check_branch
          %1038 = sbr.rel (%p1036) target = $region68
        $region67: #{tpu_custom_call.1} parent=63 // pred_region
          %s1039 = sand.u32 %s184, 1
          %s1040 = scalar_lea.sflag [#allocation5], %s1039
          %s1041 = sand.u32 %s184, 1
          %s1042 = smul.addr %s1041, 16
          %s1043 = scalar_lea.vmem [#allocation8], %s1042
          %1044 = dma.done %s1040, 256
        $region68: #{tpu_custom_call.1} parent=63 // pred_fallthru
          _
      $region64: #{tpu_custom_call.1} parent=5 // pred_fallthru
        _
    $region6: #{tpu_custom_call.1} parent=1 // loop_footer
      %s22 = sadd.s32 1, %s18
    $region7: #{tpu_custom_call.1} parent=1 // loop_footer_branch
      %17 = sbr.rel target = $region3
    $region8: #{tpu_custom_call.1} parent=1 // loop_exit
      _
    %1045 = vsyncpa [#allocation4], 1
    %s1046 = scalar_lea.sflag [#allocation4], 1
    %1047 = vsyncpa %s1046, 1
    %1048 = vsyncpa [#allocation7], 1
    %1049 = vsyncpa [#allocation5], 1
    %s1050 = scalar_lea.sflag [#allocation5], 1
    %1051 = vsyncpa %s1050, 1

</llo_original>
